<compile_context>
chip_gen: v6e
topology: v6e:2x2x1
jax: 0.10.0
libtpu: 0.0.40
codegen_flags: <defaults>
</compile_context>

<pallas_src>
from functools import partial

import jax
import jax.numpy as jnp
from jax.experimental import pallas as pl
from jax.experimental.pallas import tpu as pltpu


def _round_up(x, m):
    return (x + m - 1) // m * m


# ---------------------------------------------------------------------------
# Fused kernel: one batch image per grid step.
#   a_ref   : (1, H*W, Kp)     im2col rows of the padded image (K zero-padded)
#   w1_ref  : (Kp, C)          5x5 conv weight, (kh,kw,ci)-major, zero-padded rows
#   b_ref   : (1, C)           conv bias (f32)
#   sel_ref : (P, (H-2)*W)     one-hot stride-2 pooling selector (resident)
#   w2_ref  : (C, OC)          1x1 bottleneck weight
#   o_ref   : (1, P, OC)       P = HOUT*WOUT pooled positions
# ---------------------------------------------------------------------------
def _vtwo_fused_kernel(a_ref, w1_ref, b_ref, sel_ref, w2_ref, o_ref, *, H, W, C):
    # 5x5 conv as a single K-padded matmul (MXU, f32 accumulate) + bias + ReLU.
    y = jnp.dot(a_ref[0], w1_ref[...], preferred_element_type=jnp.float32)    # (H*W, C)
    y = jnp.maximum(y + b_ref[...], 0.0)

    # 3x3 / stride-2 max pool, vectorized over the whole image (VPU only).
    y3 = y.reshape(H, W, C)
    # all H-direction 3-window maxes (major-dim slices, cheap)
    rm = jnp.maximum(jnp.maximum(y3[0:H - 2], y3[1:H - 1]), y3[2:H])          # (H-2, W, C)
    # 3-wide sliding max along W; the two right-most columns are don't-cares,
    # so pad with zeros to keep the width at W (keeps the later merge aligned).
    rmp = jnp.concatenate([rm, jnp.zeros((H - 2, 2, C), jnp.float32)], axis=1)
    wm = jnp.maximum(jnp.maximum(rmp[:, 0:W], rmp[:, 1:W + 1]), rmp[:, 2:W + 2])
    wm2 = wm.reshape((H - 2) * W, C)          # tile-aligned merge (W % 8 == 0)

    # Stride-2 row/column subsample: ONE one-hot matmul for the whole image.
    pooled = jnp.dot(sel_ref[...], wm2, preferred_element_type=jnp.float32)   # (P, C)

    # 1x1 bottleneck conv == one lane-dense channel matmul.
    out = jnp.dot(pooled.astype(w2_ref.dtype), w2_ref[...],
                  preferred_element_type=jnp.float32)                          # (P, OC)
    o_ref[0] = out.astype(o_ref.dtype)


# ---------------------------------------------------------------------------
# Wrapper: pre-pack weights once, return a jitted NCHW forward.
# ---------------------------------------------------------------------------
def make_vtwo_forward(params, compute_dtype=jnp.bfloat16):
    w1 = jnp.asarray(params["weight"], jnp.float32)               # (C, Cin, 5, 5)
    b1 = jnp.asarray(params["bias"], jnp.float32)                 # (C,)
    w2 = jnp.asarray(params["bottleneck_weight"], jnp.float32)    # (OC, C, 1, 1)

    C, Cin, KH, KW = w1.shape
    OC = w2.shape[0]
    K = KH * KW * Cin
    Kp = _round_up(K, 128)                      # lane-dense, unmasked MXU K pass

    # Weight re-layouts done ONCE (kept out of the per-call path).
    w1m = jnp.transpose(w1, (2, 3, 1, 0)).reshape(K, C)            # ((kh,kw,ci), co)
    w1m = jnp.pad(w1m, ((0, Kp - K), (0, 0))).astype(compute_dtype)
    bm = b1.reshape(1, C)                                          # bias stays f32
    w2m = jnp.transpose(w2[:, :, 0, 0], (1, 0)).astype(compute_dtype)   # (C, OC)

    @jax.jit
    def forward(x_nchw):
        N, cin, H, W = x_nchw.shape
        assert cin == Cin
        assert H >= KH and W >= KW and W % 8 == 0, "fused pool path needs W % 8 == 0"
        HOUT = (H - 3) // 2 + 1
        WOUT = (W - 3) // 2 + 1
        P = HOUT * WOUT

        # --- XLA glue: pad + im2col + cast to the MXU operand dtype ---
        x_nhwc = jnp.transpose(x_nchw, (0, 2, 3, 1))
        pad = (KH - 1) // 2
        xp = jnp.pad(x_nhwc, ((0, 0), (pad, pad), (pad, pad), (0, 0)))
        cols = [xp[:, kh:kh + H, kw:kw + W, :] for kh in range(KH) for kw in range(KW)]
        A = jnp.concatenate(cols, axis=-1).reshape(N, H * W, K)
        A = jnp.pad(A, ((0, 0), (0, 0), (0, Kp - K))).astype(compute_dtype)

        # One-hot selector (constant-folded by XLA): output (ho, wo) takes the
        # 3x3 window max stored at merged row (2*ho)*W + 2*wo.
        p_ids = jnp.arange(P)
        src = (p_ids // WOUT) * (2 * W) + (p_ids % WOUT) * 2
        sel = (jnp.arange((H - 2) * W)[None, :] == src[:, None]).astype(jnp.float32)

        out = pl.pallas_call(
            partial(_vtwo_fused_kernel, H=H, W=W, C=C),
            out_shape=jax.ShapeDtypeStruct((N, P, OC), jnp.float32),
            grid=(N,),
            in_specs=[
                pl.BlockSpec((1, H * W, Kp), lambda n: (n, 0, 0)),
                pl.BlockSpec((Kp, C), lambda n: (0, 0)),             # resident
                pl.BlockSpec((1, C), lambda n: (0, 0)),              # resident
                pl.BlockSpec((P, (H - 2) * W), lambda n: (0, 0)),    # resident
                pl.BlockSpec((C, OC), lambda n: (0, 0)),             # resident
            ],
            out_specs=pl.BlockSpec((1, P, OC), lambda n: (n, 0, 0)),
            compiler_params=pltpu.CompilerParams(
                dimension_semantics=("parallel",)),
        )(A, w1m, bm, sel, w2m)

        out = out.reshape(N, HOUT, WOUT, OC)
        return jnp.transpose(out, (0, 3, 1, 2))                      # back to NCHW

    return forward


# ---------------------------------------------------------------------------
# Parameter synthesis + pure-JAX reference (correctness check only)
# ---------------------------------------------------------------------------
def init_params(key, cin, co1=192, out_channels=128):
    # TODO(synk): ckpt_data['weight'/'bias'] come from a checkpoint file; they are
    # synthesized deterministically here (5x5 kernel inferred from padding=2,
    # 192 output channels required by the bottleneck input).
    k1, k2, k3 = jax.random.split(key, 3)
    w1 = jax.random.normal(k1, (co1, cin, 5, 5), jnp.float32) * jnp.sqrt(2.0 / (cin * 25))
    b1 = jax.random.normal(k2, (co1,), jnp.float32) * 0.01
    # bottleneck: kaiming_normal_(mode='fan_out', relu) -> std = sqrt(2 / out_channels)
    w2 = jax.random.normal(k3, (out_channels, co1, 1, 1), jnp.float32) * jnp.sqrt(2.0 / out_channels)
    return dict(weight=w1, bias=b1, bottleneck_weight=w2)


def reference_forward(x, p):
    y = jax.lax.conv_general_dilated(x, p["weight"], (1, 1), ((2, 2), (2, 2)),
                                     dimension_numbers=("NCHW", "OIHW", "NCHW"))
    y = y + p["bias"][None, :, None, None]
    y = jnp.maximum(y, 0.0)
    y = jax.lax.reduce_window(y, -jnp.inf, jax.lax.max,
                              (1, 1, 3, 3), (1, 1, 2, 2), "VALID")
    return jax.lax.conv_general_dilated(y, p["bottleneck_weight"], (1, 1), ((0, 0), (0, 0)),
                                        dimension_numbers=("NCHW", "OIHW", "NCHW"))


if __name__ == "__main__":
    key = jax.random.PRNGKey(0)
    kx, kp = jax.random.split(key)

    N, Cin, H, W = 2, 4, 16, 16
    x = jax.random.normal(kx, (N, Cin, H, W), jnp.float32)
    params = init_params(kp, Cin)

    ref = jax.block_until_ready(reference_forward(x, params))

    # f32 MXU operands: tight correctness check.
    out32 = jax.block_until_ready(make_vtwo_forward(params, jnp.float32)(x))
    assert out32.shape == (N, 128, 7, 7), out32.shape
    assert jnp.allclose(out32, ref, rtol=1e-3, atol=1e-3), \
        float(jnp.max(jnp.abs(out32 - ref)))

    # bf16 MXU operands (v6e/v7x fast path), f32 accumulation: loose check.
    out16 = jax.block_until_ready(make_vtwo_forward(params, jnp.bfloat16)(x))
    assert out16.shape == (N, 128, 7, 7), out16.shape
    err = float(jnp.max(jnp.abs(out16 - ref)))
    assert err < 5e-2 * float(jnp.max(jnp.abs(ref))) + 1e-2, err

    print("KERNEL_OK")
</pallas_src>

<mosaic_0001>
module attributes {stable_mosaic.version = 11 : i64} {
  func.func @_vtwo_fused_kernel(%arg0: i32, %arg1: memref<1x256x128xf32, #tpu.memory_space<vmem>>, %arg2: memref<128x192xf32, #tpu.memory_space<vmem>>, %arg3: memref<1x192xf32, #tpu.memory_space<vmem>>, %arg4: memref<49x224xf32, #tpu.memory_space<vmem>>, %arg5: memref<192x128xf32, #tpu.memory_space<vmem>>, %arg6: memref<1x49x128xf32, #tpu.memory_space<vmem>>) attributes {dimension_semantics = [#tpu.dimension_semantics<parallel>], iteration_bounds = array<i64: 2>, scalar_prefetch = 0 : i64, scratch_operands = 0 : i64, tpu.core_type = #tpu.core_type<tc>, window_params = [{transform_indices = @transform_0, window_bounds = array<i64: 1, 256, 128>}, {pipeline_mode = #tpu.pipeline_mode<synchronous>, transform_indices = @transform_1, window_bounds = array<i64: 128, 192>}, {pipeline_mode = #tpu.pipeline_mode<synchronous>, transform_indices = @transform_2, window_bounds = array<i64: 1, 192>}, {pipeline_mode = #tpu.pipeline_mode<synchronous>, transform_indices = @transform_3, window_bounds = array<i64: 49, 224>}, {pipeline_mode = #tpu.pipeline_mode<synchronous>, transform_indices = @transform_4, window_bounds = array<i64: 192, 128>}, {transform_indices = @transform_5, window_bounds = array<i64: 1, 49, 128>}]} {
    %c0 = arith.constant 0 : index
    %c0_0 = arith.constant 0 : index
    %c0_1 = arith.constant 0 : index
    %0 = vector.load %arg1[%c0, %c0_0, %c0_1] : memref<1x256x128xf32, #tpu.memory_space<vmem>>, vector<1x256x128xf32>
    %1 = vector.shape_cast %0 : vector<1x256x128xf32> to vector<256x128xf32>
    %c0_2 = arith.constant 0 : index
    %c0_3 = arith.constant 0 : index
    %2 = vector.load %arg2[%c0_2, %c0_3] : memref<128x192xf32, #tpu.memory_space<vmem>>, vector<128x192xf32>
    %cst = arith.constant dense<0.000000e+00> : vector<256x192xf32>
    %3 = tpu.matmul %1, %2, %cst {dimension_numbers = #tpu.dot_dimension_numbers<[1], [0], [0], [1], [0, 0, 1, 1], [], []>} : vector<256x128xf32>, vector<128x192xf32>, vector<256x192xf32> -> vector<256x192xf32>
    %c0_4 = arith.constant 0 : index
    %c0_5 = arith.constant 0 : index
    %4 = vector.load %arg3[%c0_4, %c0_5] : memref<1x192xf32, #tpu.memory_space<vmem>>, vector<1x192xf32>
    %5 = vector.broadcast %4 : vector<1x192xf32> to vector<256x192xf32>
    %6 = arith.addf %3, %5 : vector<256x192xf32>
    %cst_6 = arith.constant 0.000000e+00 : f32
    %7 = vector.broadcast %cst_6 : f32 to vector<256x192xf32>
    %8 = arith.maximumf %6, %7 : vector<256x192xf32>
    %9 = vector.shape_cast %8 : vector<256x192xf32> to vector<16x16x192xf32>
    %10 = vector.extract_strided_slice %9 {offsets = [0, 0, 0], sizes = [14, 16, 192], strides = [1, 1, 1]} : vector<16x16x192xf32> to vector<14x16x192xf32>
    %11 = vector.extract_strided_slice %9 {offsets = [1, 0, 0], sizes = [14, 16, 192], strides = [1, 1, 1]} : vector<16x16x192xf32> to vector<14x16x192xf32>
    %12 = arith.maximumf %10, %11 : vector<14x16x192xf32>
    %13 = vector.extract_strided_slice %9 {offsets = [2, 0, 0], sizes = [14, 16, 192], strides = [1, 1, 1]} : vector<16x16x192xf32> to vector<14x16x192xf32>
    %14 = arith.maximumf %12, %13 : vector<14x16x192xf32>
    %cst_7 = arith.constant 0.000000e+00 : f32
    %15 = vector.broadcast %cst_7 : f32 to vector<14x2x192xf32>
    %16 = tpu.concatenate %14, %15 in 1 : vector<14x16x192xf32>, vector<14x2x192xf32> -> vector<14x18x192xf32>
    %17 = vector.extract_strided_slice %16 {offsets = [0, 0, 0], sizes = [14, 16, 192], strides = [1, 1, 1]} : vector<14x18x192xf32> to vector<14x16x192xf32>
    %18 = vector.extract_strided_slice %16 {offsets = [0, 1, 0], sizes = [14, 16, 192], strides = [1, 1, 1]} : vector<14x18x192xf32> to vector<14x16x192xf32>
    %19 = arith.maximumf %17, %18 : vector<14x16x192xf32>
    %20 = vector.extract_strided_slice %16 {offsets = [0, 2, 0], sizes = [14, 16, 192], strides = [1, 1, 1]} : vector<14x18x192xf32> to vector<14x16x192xf32>
    %21 = arith.maximumf %19, %20 : vector<14x16x192xf32>
    %22 = vector.shape_cast %21 : vector<14x16x192xf32> to vector<224x192xf32>
    %c0_8 = arith.constant 0 : index
    %c0_9 = arith.constant 0 : index
    %23 = vector.load %arg4[%c0_8, %c0_9] : memref<49x224xf32, #tpu.memory_space<vmem>>, vector<49x224xf32>
    %cst_10 = arith.constant dense<0.000000e+00> : vector<49x192xf32>
    %24 = tpu.matmul %23, %22, %cst_10 {dimension_numbers = #tpu.dot_dimension_numbers<[1], [0], [0], [1], [0, 0, 1, 1], [], []>} : vector<49x224xf32>, vector<224x192xf32>, vector<49x192xf32> -> vector<49x192xf32>
    %c0_11 = arith.constant 0 : index
    %c0_12 = arith.constant 0 : index
    %25 = vector.load %arg5[%c0_11, %c0_12] : memref<192x128xf32, #tpu.memory_space<vmem>>, vector<192x128xf32>
    %cst_13 = arith.constant dense<0.000000e+00> : vector<49x128xf32>
    %26 = tpu.matmul %24, %25, %cst_13 {dimension_numbers = #tpu.dot_dimension_numbers<[1], [0], [0], [1], [0, 0, 1, 1], [], []>} : vector<49x192xf32>, vector<192x128xf32>, vector<49x128xf32> -> vector<49x128xf32>
    %c0_14 = arith.constant 0 : index
    %c0_15 = arith.constant 0 : index
    %c0_16 = arith.constant 0 : index
    %27 = vector.load %arg6[%c0_14, %c0_15, %c0_16] : memref<1x49x128xf32, #tpu.memory_space<vmem>>, vector<1x49x128xf32>
    %28 = vector.shape_cast %27 : vector<1x49x128xf32> to vector<49x128xf32>
    %29 = vector.shape_cast %26 : vector<49x128xf32> to vector<1x49x128xf32>
    tpu.vector_store %arg6[%c0_14, %c0_15, %c0_16], %29 {strides = array<i32>} : memref<1x49x128xf32, #tpu.memory_space<vmem>>, vector<1x49x128xf32>,
    return
  }
  func.func @transform_0(%arg0: i32) -> (i32, i32, i32) {
    %c0_i32 = arith.constant 0 : i32
    %c0_i32_0 = arith.constant 0 : i32
    %c0_i32_1 = arith.constant 0 : i32
    return %arg0, %c0_i32, %c0_i32_0 : i32, i32, i32
  }
  func.func @transform_1(%arg0: i32) -> (i32, i32) {
    %c0_i32 = arith.constant 0 : i32
    %c0_i32_0 = arith.constant 0 : i32
    %c0_i32_1 = arith.constant 0 : i32
    return %c0_i32, %c0_i32_0 : i32, i32
  }
  func.func @transform_2(%arg0: i32) -> (i32, i32) {
    %c0_i32 = arith.constant 0 : i32
    %c0_i32_0 = arith.constant 0 : i32
    %c0_i32_1 = arith.constant 0 : i32
    return %c0_i32, %c0_i32_0 : i32, i32
  }
  func.func @transform_3(%arg0: i32) -> (i32, i32) {
    %c0_i32 = arith.constant 0 : i32
    %c0_i32_0 = arith.constant 0 : i32
    %c0_i32_1 = arith.constant 0 : i32
    return %c0_i32, %c0_i32_0 : i32, i32
  }
  func.func @transform_4(%arg0: i32) -> (i32, i32) {
    %c0_i32 = arith.constant 0 : i32
    %c0_i32_0 = arith.constant 0 : i32
    %c0_i32_1 = arith.constant 0 : i32
    return %c0_i32, %c0_i32_0 : i32, i32
  }
  func.func @transform_5(%arg0: i32) -> (i32, i32, i32) {
    %c0_i32 = arith.constant 0 : i32
    %c0_i32_0 = arith.constant 0 : i32
    %c0_i32_1 = arith.constant 0 : i32
    return %arg0, %c0_i32, %c0_i32_0 : i32, i32, i32
  }
}

</mosaic_0001>

<llo_original>
// kernel: forward.1
$region0: #{forward.1}
  #allocation0 [shape = 'u32[]', space=smem, size = 0x4, offset = 0x4, fixed_abs, tag = 'smem constant byte address 0x4 - core index']
  #allocation1 [shape = 'u32[144,128]{1,0:T(1,128)}', space=vmem, size = 0x12000, scoped, tag = 'internal scratch']
  %s0 = inlined_call_operand.vmem [shape: f32[2,256,128], index: 0, kind: input, shape index: {}]
  %s1 = inlined_call_operand.vmem [shape: f32[128,192], index: 1, kind: input, shape index: {}]
  %s2 = inlined_call_operand.vmem [shape: f32[1,192], index: 2, kind: input, shape index: {}]
  %s3 = inlined_call_operand.vmem [shape: f32[49,224], index: 3, kind: input, shape index: {}]
  %s4 = inlined_call_operand.vmem [shape: f32[192,128], index: 4, kind: input, shape index: {}]
  %s5 = inlined_call_operand.vmem [shape: f32[2,49,128], index: 5, kind: output, shape index: {}]
  %s6 = sld [smem:[#allocation0]]
  $region53: #{forward.1} parent=0
    _
  %s8 = ssub.s32 1, %s6
  %s9 = scalar_select 0, %s8, %s6
  loop: start=0, step=1, limit=4
  $region2: #{forward.1} parent=0 // loop_pre_header
    _
  $region3: #{forward.1} parent=0 // loop_header
    %s11 = sphi 0, %s15
    %p12 = scmp.ge.s32.totalorder %s11, 4
    %s21 = sphi 0, %s23
    %s24 = sphi 0, %s21
    %s25 = sphi 0, %s24
    %s41 = sphi 0, %s25
    %s45 = sphi 0, %s45
    %s47 = sphi 0, %s45
    %s48 = sphi 0, %s47
    %s62 = sphi 0, %s48
    %s66 = sphi 0, %s66
    %s68 = sphi 0, %s66
    %s69 = sphi 0, %s68
    %s83 = sphi 0, %s69
    %s87 = sphi 0, %s87
    %s89 = sphi 0, %s87
    %s90 = sphi 0, %s89
    %s104 = sphi 0, %s90
    %s108 = sphi 0, %s108
    %s110 = sphi 0, %s108
    %s111 = sphi 0, %s110
    %s125 = sphi 0, %s111
    %s131 = sphi 0, %s133
    %s134 = sphi 0, %s131
    %s135 = sphi 0, %s134
    %s151 = sphi 0, %s135
  $region4: #{forward.1} parent=0 // loop_header_branch
    %14 = sbr.rel (%p12) target = $region8
  $region5: #{forward.1} parent=0 // loop_body
    %s16 = ssub.s32 %s11, 1
    %s17 = ssub.s32 %s11, 2
    %s18 = sadd.s32 %s11, 1
    %s19 = ssub.s32 %s11, %s18
    %p20 = scmp.eq.s32.totalorder %s19, 0
    %s22 = sadd.s32 %s21, 1
    %s23 = scalar_select %p20, %s21, %s22
    %p26 = pneg %p20
    %p27 = scmp.eq.s32.totalorder %s11, 1
    %p28 = por %p26, %p27
    %p29 = scmp.ne.s32.totalorder %s21, %s24
    %p30 = scmp.eq.s32.totalorder %s11, 0
    %p31 = por %p29, %p30
    %p32 = scmp.ne.s32.totalorder %s21, %s24
    %p33 = scmp.eq.s32.totalorder %s16, 1
    %p34 = por %p32, %p33
    %p35 = scmp.ne.s32.totalorder %s24, %s25
    %p36 = scmp.eq.s32.totalorder %s16, 0
    %p37 = por %p35, %p36
    %p38 = scmp.ne.s32.totalorder %s24, %s25
    %p39 = scmp.eq.s32.totalorder %s17, 1
    %p40 = por %p38, %p39
    %p42 = scmp.ne.s32.totalorder %s25, %s41
    %p43 = scmp.eq.s32.totalorder %s17, 0
    %p44 = por %p42, %p43
    %s46 = sadd.s32 %s45, 1
    %p49 = scmp.eq.s32.totalorder %s11, 1
    %p50 = scmp.ne.s32.totalorder %s45, %s47
    %p51 = scmp.eq.s32.totalorder %s11, 0
    %p52 = por %p50, %p51
    %p53 = scmp.ne.s32.totalorder %s45, %s47
    %p54 = scmp.eq.s32.totalorder %s16, 1
    %p55 = por %p53, %p54
    %p56 = scmp.ne.s32.totalorder %s47, %s48
    %p57 = scmp.eq.s32.totalorder %s16, 0
    %p58 = por %p56, %p57
    %p59 = scmp.ne.s32.totalorder %s47, %s48
    %p60 = scmp.eq.s32.totalorder %s17, 1
    %p61 = por %p59, %p60
    %p63 = scmp.ne.s32.totalorder %s48, %s62
    %p64 = scmp.eq.s32.totalorder %s17, 0
    %p65 = por %p63, %p64
    %s67 = sadd.s32 %s66, 1
    %p70 = scmp.eq.s32.totalorder %s11, 1
    %p71 = scmp.ne.s32.totalorder %s66, %s68
    %p72 = scmp.eq.s32.totalorder %s11, 0
    %p73 = por %p71, %p72
    %p74 = scmp.ne.s32.totalorder %s66, %s68
    %p75 = scmp.eq.s32.totalorder %s16, 1
    %p76 = por %p74, %p75
    %p77 = scmp.ne.s32.totalorder %s68, %s69
    %p78 = scmp.eq.s32.totalorder %s16, 0
    %p79 = por %p77, %p78
    %p80 = scmp.ne.s32.totalorder %s68, %s69
    %p81 = scmp.eq.s32.totalorder %s17, 1
    %p82 = por %p80, %p81
    %p84 = scmp.ne.s32.totalorder %s69, %s83
    %p85 = scmp.eq.s32.totalorder %s17, 0
    %p86 = por %p84, %p85
    %s88 = sadd.s32 %s87, 1
    %p91 = scmp.eq.s32.totalorder %s11, 1
    %p92 = scmp.ne.s32.totalorder %s87, %s89
    %p93 = scmp.eq.s32.totalorder %s11, 0
    %p94 = por %p92, %p93
    %p95 = scmp.ne.s32.totalorder %s87, %s89
    %p96 = scmp.eq.s32.totalorder %s16, 1
    %p97 = por %p95, %p96
    %p98 = scmp.ne.s32.totalorder %s89, %s90
    %p99 = scmp.eq.s32.totalorder %s16, 0
    %p100 = por %p98, %p99
    %p101 = scmp.ne.s32.totalorder %s89, %s90
    %p102 = scmp.eq.s32.totalorder %s17, 1
    %p103 = por %p101, %p102
    %p105 = scmp.ne.s32.totalorder %s90, %s104
    %p106 = scmp.eq.s32.totalorder %s17, 0
    %p107 = por %p105, %p106
    %s109 = sadd.s32 %s108, 1
    %p112 = scmp.eq.s32.totalorder %s11, 1
    %p113 = scmp.ne.s32.totalorder %s108, %s110
    %p114 = scmp.eq.s32.totalorder %s11, 0
    %p115 = por %p113, %p114
    %p116 = scmp.ne.s32.totalorder %s108, %s110
    %p117 = scmp.eq.s32.totalorder %s16, 1
    %p118 = por %p116, %p117
    %p119 = scmp.ne.s32.totalorder %s110, %s111
    %p120 = scmp.eq.s32.totalorder %s16, 0
    %p121 = por %p119, %p120
    %p122 = scmp.ne.s32.totalorder %s110, %s111
    %p123 = scmp.eq.s32.totalorder %s17, 1
    %p124 = por %p122, %p123
    %p126 = scmp.ne.s32.totalorder %s111, %s125
    %p127 = scmp.eq.s32.totalorder %s17, 0
    %p128 = por %p126, %p127
    %s129 = ssub.s32 %s11, %s18
    %p130 = scmp.eq.s32.totalorder %s129, 0
    %s132 = sadd.s32 %s131, 1
    %s133 = scalar_select %p130, %s131, %s132
    %p136 = pneg %p130
    %p137 = scmp.eq.s32.totalorder %s11, 1
    %p138 = por %p136, %p137
    %p139 = scmp.ne.s32.totalorder %s131, %s134
    %p140 = scmp.eq.s32.totalorder %s11, 0
    %p141 = por %p139, %p140
    %p142 = scmp.ne.s32.totalorder %s131, %s134
    %p143 = scmp.eq.s32.totalorder %s16, 1
    %p144 = por %p142, %p143
    %p145 = scmp.ne.s32.totalorder %s134, %s135
    %p146 = scmp.eq.s32.totalorder %s16, 0
    %p147 = por %p145, %p146
    %p148 = scmp.ne.s32.totalorder %s134, %s135
    %p149 = scmp.eq.s32.totalorder %s17, 1
    %p150 = por %p148, %p149
    %p152 = scmp.ne.s32.totalorder %s135, %s151
    %p153 = scmp.eq.s32.totalorder %s17, 0
    %p154 = por %p152, %p153
    %p155 = scmp.le.s32.totalorder 1, %s11
    %p156 = scmp.lt.s32.totalorder %s11, 3
    %p157 = pnand %p155, %p156
    %p158 = pneg %p157
    // Predicated region
    $region9: #{forward.1} parent=5 // pred_check
      _
    $region10: #{forward.1} parent=5 // pred_check_branch
      %160 = sbr.rel (%p157) target = $region12
    $region11: #{forward.1} parent=5 // pred_region
      %s161 = ssub.s32 %s11, 1
      // Predicated region
      $region13: #{forward.1} parent=11 // pred_check
        %p162 = pneg %p58
      $region14: #{forward.1} parent=11 // pred_check_branch
        %164 = sbr.rel (%p162) target = $region16
      $region15: #{forward.1} parent=11 // pred_region
        _
      $region16: #{forward.1} parent=11 // pred_fallthru
        _
      // Predicated region
      $region17: #{forward.1} parent=11 // pred_check
        %p165 = pneg %p79
      $region18: #{forward.1} parent=11 // pred_check_branch
        %167 = sbr.rel (%p165) target = $region20
      $region19: #{forward.1} parent=11 // pred_region
        _
      $region20: #{forward.1} parent=11 // pred_fallthru
        _
      // Predicated region
      $region21: #{forward.1} parent=11 // pred_check
        %p168 = pneg %p100
      $region22: #{forward.1} parent=11 // pred_check_branch
        %170 = sbr.rel (%p168) target = $region24
      $region23: #{forward.1} parent=11 // pred_region
        _
      $region24: #{forward.1} parent=11 // pred_fallthru
        _
      // Predicated region
      $region25: #{forward.1} parent=11 // pred_check
        %p171 = pneg %p121
      $region26: #{forward.1} parent=11 // pred_check_branch
        %173 = sbr.rel (%p171) target = $region28
      $region27: #{forward.1} parent=11 // pred_region
        _
      $region28: #{forward.1} parent=11 // pred_fallthru
        _
    $region12: #{forward.1} parent=5 // pred_fallthru
      _
    %p174 = scmp.lt.s32.totalorder %s11, 2
    // Predicated region
    $region29: #{forward.1} parent=5 // pred_check
      %p175 = pneg %p174
    $region30: #{forward.1} parent=5 // pred_check_branch
      %177 = sbr.rel (%p175) target = $region32
    $region31: #{forward.1} parent=5 // pred_region
      // Predicated region
      $region33: #{forward.1} parent=31 // pred_check
        %p178 = pneg %p31
      $region34: #{forward.1} parent=31 // pred_check_branch
        %180 = sbr.rel (%p178) target = $region36
      $region35: #{forward.1} parent=31 // pred_region
        %p181 = scmp.lt.s32.totalorder %s11, 1
        %s182 = scalar_select %p181, %s11, 1
        %s183 = smul.addr %s182, 32
        %s184 = smul.addr %s183, 8
        %s185 = scalar_lea.vmem %s0, %s184
      $region36: #{forward.1} parent=31 // pred_fallthru
        _
    $region32: #{forward.1} parent=5 // pred_fallthru
      _
    %p186 = scmp.le.s32.totalorder 1, %s11
    %p187 = scmp.lt.s32.totalorder %s11, 3
    %p188 = pnand %p186, %p187
    %p189 = pneg %p188
    // Predicated region
    $region37: #{forward.1} parent=5 // pred_check
      _
    $region38: #{forward.1} parent=5 // pred_check_branch
      %191 = sbr.rel (%p188) target = $region40
    $region39: #{forward.1} parent=5 // pred_region
      %s192 = ssub.s32 %s11, 1
      %p193 = scmp.lt.s32.totalorder %s16, 1
      %s194 = scalar_select %p193, %s16, 1
      %s195 = smul.addr %s194, 32
      %s196 = smul.addr %s195, 8
      %s197 = scalar_lea.vmem %s0, %s196
      %p198 = pneg %p37
      %p199 = pneg %p34
      %p200 = pneg %p58
      %p201 = pneg %p55
      %p202 = pneg %p79
      %p203 = pneg %p76
      %p204 = pneg %p100
      %p205 = pneg %p97
      %p206 = pneg %p121
      %p207 = pneg %p118
      %p208 = pneg %p147
      %p209 = pneg %p144
      %p210 = scmp.lt.s32.totalorder %s16, 1
      %s211 = scalar_select %p210, %s16, 1
      %s212 = smul.addr %s211, 7
      %s213 = smul.addr %s212, 8
      %s214 = scalar_lea.vmem %s5, %s213
      %p215 = scmp.lt.s32.totalorder %s16, 1
      %s216 = scalar_select %p215, %s16, 1
      %s217 = smul.addr %s216, 32
      %s218 = smul.addr %s217, 8
      %s219 = scalar_lea.vmem %s0, %s218
      %p220 = scmp.lt.s32.totalorder %s16, 1
      %s221 = scalar_select %p220, %s16, 1
      %s222 = smul.addr %s221, 7
      %s223 = smul.addr %s222, 8
      %s224 = scalar_lea.vmem %s5, %s223
      %v225 = vld [vmem:[%s219] sm:$0xff]
      %v226 = vld [vmem:[%s219 + $0x8] sm:$0xff]
      %v227 = vld [vmem:[%s219 + $0x10] sm:$0xff]
      %v228 = vld [vmem:[%s219 + $0x18] sm:$0xff]
      %v229 = vld [vmem:[%s219 + $0x20] sm:$0xff]
      %v230 = vld [vmem:[%s219 + $0x28] sm:$0xff]
      %v231 = vld [vmem:[%s219 + $0x30] sm:$0xff]
      %v232 = vld [vmem:[%s219 + $0x38] sm:$0xff]
      %v233 = vld [vmem:[%s219 + $0x40] sm:$0xff]
      %v234 = vld [vmem:[%s219 + $0x48] sm:$0xff]
      %v235 = vld [vmem:[%s219 + $0x50] sm:$0xff]
      %v236 = vld [vmem:[%s219 + $0x58] sm:$0xff]
      %v237 = vld [vmem:[%s219 + $0x60] sm:$0xff]
      %v238 = vld [vmem:[%s219 + $0x68] sm:$0xff]
      %v239 = vld [vmem:[%s219 + $0x70] sm:$0xff]
      %v240 = vld [vmem:[%s219 + $0x78] sm:$0xff]
      %v241 = vld [vmem:[%s219 + $0x80] sm:$0xff]
      %v242 = vld [vmem:[%s219 + $0x88] sm:$0xff]
      %v243 = vld [vmem:[%s219 + $0x90] sm:$0xff]
      %v244 = vld [vmem:[%s219 + $0x98] sm:$0xff]
      %v245 = vld [vmem:[%s219 + $0xa0] sm:$0xff]
      %v246 = vld [vmem:[%s219 + $0xa8] sm:$0xff]
      %v247 = vld [vmem:[%s219 + $0xb0] sm:$0xff]
      %v248 = vld [vmem:[%s219 + $0xb8] sm:$0xff]
      %v249 = vld [vmem:[%s219 + $0xc0] sm:$0xff]
      %v250 = vld [vmem:[%s219 + $0xc8] sm:$0xff]
      %v251 = vld [vmem:[%s219 + $0xd0] sm:$0xff]
      %v252 = vld [vmem:[%s219 + $0xd8] sm:$0xff]
      %v253 = vld [vmem:[%s219 + $0xe0] sm:$0xff]
      %v254 = vld [vmem:[%s219 + $0xe8] sm:$0xff]
      %v255 = vld [vmem:[%s219 + $0xf0] sm:$0xff]
      %v256 = vld [vmem:[%s219 + $0xf8] sm:$0xff]
      %v257 = vld [vmem:[%s1] sm:$0xff]
      %v258 = vld [vmem:[%s1 + $0x8] sm:$0xff]
      %v259 = vld [vmem:[%s1 + $0x10] sm:$0xff]
      %v260 = vld [vmem:[%s1 + $0x18] sm:$0xff]
      %v261 = vld [vmem:[%s1 + $0x20] sm:$0xff]
      %v262 = vld [vmem:[%s1 + $0x28] sm:$0xff]
      %v263 = vld [vmem:[%s1 + $0x30] sm:$0xff]
      %v264 = vld [vmem:[%s1 + $0x38] sm:$0xff]
      %v265 = vld [vmem:[%s1 + $0x40] sm:$0xff]
      %v266 = vld [vmem:[%s1 + $0x48] sm:$0xff]
      %v267 = vld [vmem:[%s1 + $0x50] sm:$0xff]
      %v268 = vld [vmem:[%s1 + $0x58] sm:$0xff]
      %v269 = vld [vmem:[%s1 + $0x60] sm:$0xff]
      %v270 = vld [vmem:[%s1 + $0x68] sm:$0xff]
      %v271 = vld [vmem:[%s1 + $0x70] sm:$0xff]
      %v272 = vld [vmem:[%s1 + $0x78] sm:$0xff]
      %v273 = vld [vmem:[%s1 + $0x80] sm:$0xff]
      %v274 = vld [vmem:[%s1 + $0x88] sm:$0xff]
      %v275 = vld [vmem:[%s1 + $0x90] sm:$0xff]
      %v276 = vld [vmem:[%s1 + $0x98] sm:$0xff]
      %v277 = vld [vmem:[%s1 + $0xa0] sm:$0xff]
      %v278 = vld [vmem:[%s1 + $0xa8] sm:$0xff]
      %v279 = vld [vmem:[%s1 + $0xb0] sm:$0xff]
      %v280 = vld [vmem:[%s1 + $0xb8] sm:$0xff]
      %v281 = vld [vmem:[%s1 + $0xc0] sm:$0xff]
      %v282 = vld [vmem:[%s1 + $0xc8] sm:$0xff]
      %v283 = vld [vmem:[%s1 + $0xd0] sm:$0xff]
      %v284 = vld [vmem:[%s1 + $0xd8] sm:$0xff]
      %v285 = vld [vmem:[%s1 + $0xe0] sm:$0xff]
      %v286 = vld [vmem:[%s1 + $0xe8] sm:$0xff]
      %v287 = vld [vmem:[%s1 + $0xf0] sm:$0xff]
      %v288 = vld [vmem:[%s1 + $0xf8] sm:$0xff]
      %v289 = vld [vmem:[%s2] sm:$0x3]
      %v291 = vlaneseq
      %v292 = vshrl.u32 %v291, 7
      %v293 = vsub.s32 0, %v292
      %v294 = vrot.slane %v289, %v293
      %v295 = vlaneseq
      %v296 = vshrl.u32 %v295, 7
      %v297 = vsub.s32 1, %v296
      %v298 = vrot.slane %v289, %v297
      %301 = vmatprep.subr.mxu0 %v288
      %302 = vmatpush1.msra.mxu0 %v287
      %303 = vmatprep.subr.mxu0 %v286
      %304 = vmatpush1.msra.mxu0 %v285
      %305 = vmatprep.subr.mxu0 %v284
      %306 = vmatpush1.msra.mxu0 %v283
      %307 = vmatprep.subr.mxu0 %v282
      %308 = vmatpush1.msra.mxu0 %v281
      %309 = vmatprep.subr.mxu0 %v280
      %310 = vmatpush1.msra.mxu0 %v279
      %311 = vmatprep.subr.mxu0 %v278
      %312 = vmatpush1.msra.mxu0 %v277
      %313 = vmatprep.subr.mxu0 %v276
      %314 = vmatpush1.msra.mxu0 %v275
      %315 = vmatprep.subr.mxu0 %v274
      %316 = vmatpush1.msra.mxu0 %v273
      %317 = vmatprep.subr.mxu0 %v272
      %318 = vmatpush1.msra.mxu0 %v271
      %319 = vmatprep.subr.mxu0 %v270
      %320 = vmatpush1.msra.mxu0 %v269
      %321 = vmatprep.subr.mxu0 %v268
      %322 = vmatpush1.msra.mxu0 %v267
      %323 = vmatprep.subr.mxu0 %v266
      %324 = vmatpush1.msra.mxu0 %v265
      %325 = vmatprep.subr.mxu0 %v264
      %326 = vmatpush1.msra.mxu0 %v263
      %327 = vmatprep.subr.mxu0 %v262
      %328 = vmatpush1.msra.mxu0 %v261
      %329 = vmatprep.subr.mxu0 %v260
      %330 = vmatpush1.msra.mxu0 %v259
      %331 = vmatprep.subr.mxu0 %v258
      %332 = vmatpush1.msra.mxu0 %v257
      %333 = vmatprep.subr.mxu0 0.0
      %334 = vmatpush2.msra.mxu0 0.0
      %335 = vmatprep.subr.mxu0 0.0
      %336 = vmatpush2.msra.mxu0 0.0
      %337 = vmatprep.subr.mxu0 0.0
      %338 = vmatpush2.msra.mxu0 0.0
      %339 = vmatprep.subr.mxu0 0.0
      %340 = vmatpush2.msra.mxu0 0.0
      %341 = vmatprep.subr.mxu0 0.0
      %342 = vmatpush2.msra.mxu0 0.0
      %343 = vmatprep.subr.mxu0 0.0
      %344 = vmatpush2.msra.mxu0 0.0
      %345 = vmatprep.subr.mxu0 0.0
      %346 = vmatpush2.msra.mxu0 0.0
      %347 = vmatprep.subr.mxu0 0.0
      %348 = vmatpush2.msra.mxu0 0.0
      %349 = vmatprep.subr.mxu0 0.0
      %350 = vmatpush2.msra.mxu0 0.0
      %351 = vmatprep.subr.mxu0 0.0
      %352 = vmatpush2.msra.mxu0 0.0
      %353 = vmatprep.subr.mxu0 0.0
      %354 = vmatpush2.msra.mxu0 0.0
      %355 = vmatprep.subr.mxu0 0.0
      %356 = vmatpush2.msra.mxu0 0.0
      %357 = vmatprep.subr.mxu0 0.0
      %358 = vmatpush2.msra.mxu0 0.0
      %359 = vmatprep.subr.mxu0 0.0
      %360 = vmatpush2.msra.mxu0 0.0
      %361 = vmatprep.subr.mxu0 0.0
      %362 = vmatpush2.msra.mxu0 0.0
      %363 = vmatprep.subr.mxu0 0.0
      %364 = vmatpush2.msra.mxu0 0.0
      %365 = vmatprep.mubr.f32.mxu0 0.0
      %366 = vmatmul.mubr.f32.gmra.mxu0 %v225
      %v367 = vpop.f32.mrf.mxu0
      %v368 = vadd.f32 %v294, %v367
      %v369 = vpop.f32.mrf.mxu0
      %v370 = vadd.f32 %v298, %v369
      %371 = vmatprep.mubr.f32.mxu0 0.0
      %372 = vmatmul.mubr.f32.gmra.mxu0 %v226
      %v373 = vpop.f32.mrf.mxu0
      %v374 = vadd.f32 %v294, %v373
      %v375 = vpop.f32.mrf.mxu0
      %v376 = vadd.f32 %v298, %v375
      %377 = vmatprep.mubr.f32.mxu0 0.0
      %378 = vmatmul.mubr.f32.gmra.mxu0 %v227
      %v379 = vpop.f32.mrf.mxu0
      %v380 = vadd.f32 %v294, %v379
      %v381 = vpop.f32.mrf.mxu0
      %v382 = vadd.f32 %v298, %v381
      %383 = vmatprep.mubr.f32.mxu0 0.0
      %384 = vmatmul.mubr.f32.gmra.mxu0 %v228
      %v385 = vpop.f32.mrf.mxu0
      %v386 = vadd.f32 %v294, %v385
      %v387 = vpop.f32.mrf.mxu0
      %v388 = vadd.f32 %v298, %v387
      %389 = vmatprep.mubr.f32.mxu0 0.0
      %390 = vmatmul.mubr.f32.gmra.mxu0 %v229
      %v391 = vpop.f32.mrf.mxu0
      %v392 = vadd.f32 %v294, %v391
      %v393 = vpop.f32.mrf.mxu0
      %v394 = vadd.f32 %v298, %v393
      %395 = vmatprep.mubr.f32.mxu0 0.0
      %396 = vmatmul.mubr.f32.gmra.mxu0 %v230
      %v397 = vpop.f32.mrf.mxu0
      %v398 = vadd.f32 %v294, %v397
      %v399 = vpop.f32.mrf.mxu0
      %v400 = vadd.f32 %v298, %v399
      %401 = vmatprep.mubr.f32.mxu0 0.0
      %402 = vmatmul.mubr.f32.gmra.mxu0 %v231
      %v403 = vpop.f32.mrf.mxu0
      %v404 = vadd.f32 %v294, %v403
      %v405 = vpop.f32.mrf.mxu0
      %v406 = vadd.f32 %v298, %v405
      %407 = vmatprep.mubr.f32.mxu0 0.0
      %408 = vmatmul.mubr.f32.gmra.mxu0 %v232
      %v409 = vpop.f32.mrf.mxu0
      %v410 = vadd.f32 %v294, %v409
      %v411 = vpop.f32.mrf.mxu0
      %v412 = vadd.f32 %v298, %v411
      %413 = vmatprep.mubr.f32.mxu0 0.0
      %414 = vmatmul.mubr.f32.gmra.mxu0 %v233
      %v415 = vpop.f32.mrf.mxu0
      %v416 = vadd.f32 %v294, %v415
      %v417 = vpop.f32.mrf.mxu0
      %v418 = vadd.f32 %v298, %v417
      %419 = vmatprep.mubr.f32.mxu0 0.0
      %420 = vmatmul.mubr.f32.gmra.mxu0 %v234
      %v421 = vpop.f32.mrf.mxu0
      %v422 = vadd.f32 %v294, %v421
      %v423 = vpop.f32.mrf.mxu0
      %v424 = vadd.f32 %v298, %v423
      %425 = vmatprep.mubr.f32.mxu0 0.0
      %426 = vmatmul.mubr.f32.gmra.mxu0 %v235
      %v427 = vpop.f32.mrf.mxu0
      %v428 = vadd.f32 %v294, %v427
      %v429 = vpop.f32.mrf.mxu0
      %v430 = vadd.f32 %v298, %v429
      %431 = vmatprep.mubr.f32.mxu0 0.0
      %432 = vmatmul.mubr.f32.gmra.mxu0 %v236
      %v433 = vpop.f32.mrf.mxu0
      %v434 = vadd.f32 %v294, %v433
      %v435 = vpop.f32.mrf.mxu0
      %v436 = vadd.f32 %v298, %v435
      %437 = vmatprep.mubr.f32.mxu0 0.0
      %438 = vmatmul.mubr.f32.gmra.mxu0 %v237
      %v439 = vpop.f32.mrf.mxu0
      %v440 = vadd.f32 %v294, %v439
      %v441 = vpop.f32.mrf.mxu0
      %v442 = vadd.f32 %v298, %v441
      %443 = vmatprep.mubr.f32.mxu0 0.0
      %444 = vmatmul.mubr.f32.gmra.mxu0 %v238
      %v445 = vpop.f32.mrf.mxu0
      %v446 = vadd.f32 %v294, %v445
      %v447 = vpop.f32.mrf.mxu0
      %v448 = vadd.f32 %v298, %v447
      %449 = vmatprep.mubr.f32.mxu0 0.0
      %450 = vmatmul.mubr.f32.gmra.mxu0 %v239
      %v451 = vpop.f32.mrf.mxu0
      %v452 = vadd.f32 %v294, %v451
      %v453 = vpop.f32.mrf.mxu0
      %v454 = vadd.f32 %v298, %v453
      %455 = vmatprep.mubr.f32.mxu0 0.0
      %456 = vmatmul.mubr.f32.gmra.mxu0 %v240
      %v457 = vpop.f32.mrf.mxu0
      %v458 = vadd.f32 %v294, %v457
      %v459 = vpop.f32.mrf.mxu0
      %v460 = vadd.f32 %v298, %v459
      %461 = vmatprep.mubr.f32.mxu0 0.0
      %462 = vmatmul.mubr.f32.gmra.mxu0 %v241
      %v463 = vpop.f32.mrf.mxu0
      %v464 = vadd.f32 %v294, %v463
      %v465 = vpop.f32.mrf.mxu0
      %v466 = vadd.f32 %v298, %v465
      %467 = vmatprep.mubr.f32.mxu0 0.0
      %468 = vmatmul.mubr.f32.gmra.mxu0 %v242
      %v469 = vpop.f32.mrf.mxu0
      %v470 = vadd.f32 %v294, %v469
      %v471 = vpop.f32.mrf.mxu0
      %v472 = vadd.f32 %v298, %v471
      %473 = vmatprep.mubr.f32.mxu0 0.0
      %474 = vmatmul.mubr.f32.gmra.mxu0 %v243
      %v475 = vpop.f32.mrf.mxu0
      %v476 = vadd.f32 %v294, %v475
      %v477 = vpop.f32.mrf.mxu0
      %v478 = vadd.f32 %v298, %v477
      %479 = vmatprep.mubr.f32.mxu0 0.0
      %480 = vmatmul.mubr.f32.gmra.mxu0 %v244
      %v481 = vpop.f32.mrf.mxu0
      %v482 = vadd.f32 %v294, %v481
      %v483 = vpop.f32.mrf.mxu0
      %v484 = vadd.f32 %v298, %v483
      %485 = vmatprep.mubr.f32.mxu0 0.0
      %486 = vmatmul.mubr.f32.gmra.mxu0 %v245
      %v487 = vpop.f32.mrf.mxu0
      %v488 = vadd.f32 %v294, %v487
      %v489 = vpop.f32.mrf.mxu0
      %v490 = vadd.f32 %v298, %v489
      %491 = vmatprep.mubr.f32.mxu0 0.0
      %492 = vmatmul.mubr.f32.gmra.mxu0 %v246
      %v493 = vpop.f32.mrf.mxu0
      %v494 = vadd.f32 %v294, %v493
      %v495 = vpop.f32.mrf.mxu0
      %v496 = vadd.f32 %v298, %v495
      %497 = vmatprep.mubr.f32.mxu0 0.0
      %498 = vmatmul.mubr.f32.gmra.mxu0 %v247
      %v499 = vpop.f32.mrf.mxu0
      %v500 = vadd.f32 %v294, %v499
      %v501 = vpop.f32.mrf.mxu0
      %v502 = vadd.f32 %v298, %v501
      %503 = vmatprep.mubr.f32.mxu0 0.0
      %504 = vmatmul.mubr.f32.gmra.mxu0 %v248
      %v505 = vpop.f32.mrf.mxu0
      %v506 = vadd.f32 %v294, %v505
      %v507 = vpop.f32.mrf.mxu0
      %v508 = vadd.f32 %v298, %v507
      %509 = vmatprep.mubr.f32.mxu0 0.0
      %510 = vmatmul.mubr.f32.gmra.mxu0 %v249
      %v511 = vpop.f32.mrf.mxu0
      %v512 = vadd.f32 %v294, %v511
      %v513 = vpop.f32.mrf.mxu0
      %v514 = vadd.f32 %v298, %v513
      %515 = vmatprep.mubr.f32.mxu0 0.0
      %516 = vmatmul.mubr.f32.gmra.mxu0 %v250
      %v517 = vpop.f32.mrf.mxu0
      %v518 = vadd.f32 %v294, %v517
      %v519 = vpop.f32.mrf.mxu0
      %v520 = vadd.f32 %v298, %v519
      %521 = vmatprep.mubr.f32.mxu0 0.0
      %522 = vmatmul.mubr.f32.gmra.mxu0 %v251
      %v523 = vpop.f32.mrf.mxu0
      %v524 = vadd.f32 %v294, %v523
      %v525 = vpop.f32.mrf.mxu0
      %v526 = vadd.f32 %v298, %v525
      %527 = vmatprep.mubr.f32.mxu0 0.0
      %528 = vmatmul.mubr.f32.gmra.mxu0 %v252
      %v529 = vpop.f32.mrf.mxu0
      %v530 = vadd.f32 %v294, %v529
      %v531 = vpop.f32.mrf.mxu0
      %v532 = vadd.f32 %v298, %v531
      %533 = vmatprep.mubr.f32.mxu0 0.0
      %534 = vmatmul.mubr.f32.gmra.mxu0 %v253
      %v535 = vpop.f32.mrf.mxu0
      %v536 = vadd.f32 %v294, %v535
      %v537 = vpop.f32.mrf.mxu0
      %v538 = vadd.f32 %v298, %v537
      %539 = vmatprep.mubr.f32.mxu0 0.0
      %540 = vmatmul.mubr.f32.gmra.mxu0 %v254
      %v541 = vpop.f32.mrf.mxu0
      %v542 = vadd.f32 %v294, %v541
      %v543 = vpop.f32.mrf.mxu0
      %v544 = vadd.f32 %v298, %v543
      %545 = vmatprep.mubr.f32.mxu0 0.0
      %546 = vmatmul.mubr.f32.gmra.mxu0 %v255
      %v547 = vpop.f32.mrf.mxu0
      %v548 = vadd.f32 %v294, %v547
      %v549 = vpop.f32.mrf.mxu0
      %v550 = vadd.f32 %v298, %v549
      %551 = vmatprep.mubr.f32.mxu0 0.0
      %552 = vmatmul.mubr.f32.gmra.mxu0 %v256
      %v553 = vpop.f32.mrf.mxu0
      %v554 = vadd.f32 %v294, %v553
      %v555 = vpop.f32.mrf.mxu0
      %v556 = vadd.f32 %v298, %v555
      %557 = vdwg.mxu0
      %v558 = vmax.f32 %v368, 0.0
      %v559 = vmax.f32 %v370, 0.0
      %v560 = vmax.f32 %v374, 0.0
      %v561 = vmax.f32 %v376, 0.0
      %v562 = vmax.f32 %v380, 0.0
      %v563 = vmax.f32 %v382, 0.0
      %v564 = vmax.f32 %v386, 0.0
      %v565 = vmax.f32 %v388, 0.0
      %v566 = vmax.f32 %v392, 0.0
      %v567 = vmax.f32 %v394, 0.0
      %v568 = vmax.f32 %v398, 0.0
      %v569 = vmax.f32 %v400, 0.0
      %v570 = vmax.f32 %v404, 0.0
      %v571 = vmax.f32 %v406, 0.0
      %v572 = vmax.f32 %v410, 0.0
      %v573 = vmax.f32 %v412, 0.0
      %v574 = vmax.f32 %v416, 0.0
      %v575 = vmax.f32 %v418, 0.0
      %v576 = vmax.f32 %v422, 0.0
      %v577 = vmax.f32 %v424, 0.0
      %v578 = vmax.f32 %v428, 0.0
      %v579 = vmax.f32 %v430, 0.0
      %v580 = vmax.f32 %v434, 0.0
      %v581 = vmax.f32 %v436, 0.0
      %v582 = vmax.f32 %v440, 0.0
      %v583 = vmax.f32 %v442, 0.0
      %v584 = vmax.f32 %v446, 0.0
      %v585 = vmax.f32 %v448, 0.0
      %v586 = vmax.f32 %v452, 0.0
      %v587 = vmax.f32 %v454, 0.0
      %v588 = vmax.f32 %v458, 0.0
      %v589 = vmax.f32 %v460, 0.0
      %v590 = vmax.f32 %v464, 0.0
      %v591 = vmax.f32 %v466, 0.0
      %v592 = vmax.f32 %v470, 0.0
      %v593 = vmax.f32 %v472, 0.0
      %v594 = vmax.f32 %v476, 0.0
      %v595 = vmax.f32 %v478, 0.0
      %v596 = vmax.f32 %v482, 0.0
      %v597 = vmax.f32 %v484, 0.0
      %v598 = vmax.f32 %v488, 0.0
      %v599 = vmax.f32 %v490, 0.0
      %v600 = vmax.f32 %v494, 0.0
      %v601 = vmax.f32 %v496, 0.0
      %v602 = vmax.f32 %v500, 0.0
      %v603 = vmax.f32 %v502, 0.0
      %v604 = vmax.f32 %v506, 0.0
      %v605 = vmax.f32 %v508, 0.0
      %v606 = vmax.f32 %v512, 0.0
      %v607 = vmax.f32 %v514, 0.0
      %v608 = vmax.f32 %v518, 0.0
      %v609 = vmax.f32 %v520, 0.0
      %v610 = vmax.f32 %v524, 0.0
      %v611 = vmax.f32 %v526, 0.0
      %v612 = vmax.f32 %v530, 0.0
      %v613 = vmax.f32 %v532, 0.0
      %v614 = vmax.f32 %v536, 0.0
      %v615 = vmax.f32 %v538, 0.0
      %v616 = vmax.f32 %v542, 0.0
      %v617 = vmax.f32 %v544, 0.0
      %v618 = vmax.f32 %v548, 0.0
      %v619 = vmax.f32 %v550, 0.0
      %v620 = vmax.f32 %v554, 0.0
      %v621 = vmax.f32 %v556, 0.0
      %v622 = vmax.f32 %v558, %v562
      %v623 = vmax.f32 %v559, %v563
      %v624 = vmax.f32 %v560, %v564
      %v625 = vmax.f32 %v561, %v565
      %v626 = vmax.f32 %v562, %v566
      %v627 = vmax.f32 %v563, %v567
      %v628 = vmax.f32 %v564, %v568
      %v629 = vmax.f32 %v565, %v569
      %v630 = vmax.f32 %v566, %v570
      %v631 = vmax.f32 %v567, %v571
      %v632 = vmax.f32 %v568, %v572
      %v633 = vmax.f32 %v569, %v573
      %v634 = vmax.f32 %v570, %v574
      %v635 = vmax.f32 %v571, %v575
      %v636 = vmax.f32 %v572, %v576
      %v637 = vmax.f32 %v573, %v577
      %v638 = vmax.f32 %v574, %v578
      %v639 = vmax.f32 %v575, %v579
      %v640 = vmax.f32 %v576, %v580
      %v641 = vmax.f32 %v577, %v581
      %v642 = vmax.f32 %v578, %v582
      %v643 = vmax.f32 %v579, %v583
      %v644 = vmax.f32 %v580, %v584
      %v645 = vmax.f32 %v581, %v585
      %v646 = vmax.f32 %v582, %v586
      %v647 = vmax.f32 %v583, %v587
      %v648 = vmax.f32 %v584, %v588
      %v649 = vmax.f32 %v585, %v589
      %v650 = vmax.f32 %v586, %v590
      %v651 = vmax.f32 %v587, %v591
      %v652 = vmax.f32 %v588, %v592
      %v653 = vmax.f32 %v589, %v593
      %v654 = vmax.f32 %v590, %v594
      %v655 = vmax.f32 %v591, %v595
      %v656 = vmax.f32 %v592, %v596
      %v657 = vmax.f32 %v593, %v597
      %v658 = vmax.f32 %v594, %v598
      %v659 = vmax.f32 %v595, %v599
      %v660 = vmax.f32 %v596, %v600
      %v661 = vmax.f32 %v597, %v601
      %v662 = vmax.f32 %v598, %v602
      %v663 = vmax.f32 %v599, %v603
      %v664 = vmax.f32 %v600, %v604
      %v665 = vmax.f32 %v601, %v605
      %v666 = vmax.f32 %v602, %v606
      %v667 = vmax.f32 %v603, %v607
      %v668 = vmax.f32 %v604, %v608
      %v669 = vmax.f32 %v605, %v609
      %v670 = vmax.f32 %v606, %v610
      %v671 = vmax.f32 %v607, %v611
      %v672 = vmax.f32 %v608, %v612
      %v673 = vmax.f32 %v609, %v613
      %v674 = vmax.f32 %v610, %v614
      %v675 = vmax.f32 %v611, %v615
      %v676 = vmax.f32 %v612, %v616
      %v677 = vmax.f32 %v613, %v617
      %v678 = vmax.f32 %v622, %v566
      %v679 = vmax.f32 %v623, %v567
      %v680 = vmax.f32 %v624, %v568
      %v681 = vmax.f32 %v625, %v569
      %v682 = vmax.f32 %v626, %v570
      %v683 = vmax.f32 %v627, %v571
      %v684 = vmax.f32 %v628, %v572
      %v685 = vmax.f32 %v629, %v573
      %v686 = vmax.f32 %v630, %v574
      %v687 = vmax.f32 %v631, %v575
      %v688 = vmax.f32 %v632, %v576
      %v689 = vmax.f32 %v633, %v577
      %v690 = vmax.f32 %v634, %v578
      %v691 = vmax.f32 %v635, %v579
      %v692 = vmax.f32 %v636, %v580
      %v693 = vmax.f32 %v637, %v581
      %v694 = vmax.f32 %v638, %v582
      %v695 = vmax.f32 %v639, %v583
      %v696 = vmax.f32 %v640, %v584
      %v697 = vmax.f32 %v641, %v585
      %v698 = vmax.f32 %v642, %v586
      %v699 = vmax.f32 %v643, %v587
      %v700 = vmax.f32 %v644, %v588
      %v701 = vmax.f32 %v645, %v589
      %v702 = vmax.f32 %v646, %v590
      %v703 = vmax.f32 %v647, %v591
      %v704 = vmax.f32 %v648, %v592
      %v705 = vmax.f32 %v649, %v593
      %v706 = vmax.f32 %v650, %v594
      %v707 = vmax.f32 %v651, %v595
      %v708 = vmax.f32 %v652, %v596
      %v709 = vmax.f32 %v653, %v597
      %v710 = vmax.f32 %v654, %v598
      %v711 = vmax.f32 %v655, %v599
      %v712 = vmax.f32 %v656, %v600
      %v713 = vmax.f32 %v657, %v601
      %v714 = vmax.f32 %v658, %v602
      %v715 = vmax.f32 %v659, %v603
      %v716 = vmax.f32 %v660, %v604
      %v717 = vmax.f32 %v661, %v605
      %v718 = vmax.f32 %v662, %v606
      %v719 = vmax.f32 %v663, %v607
      %v720 = vmax.f32 %v664, %v608
      %v721 = vmax.f32 %v665, %v609
      %v722 = vmax.f32 %v666, %v610
      %v723 = vmax.f32 %v667, %v611
      %v724 = vmax.f32 %v668, %v612
      %v725 = vmax.f32 %v669, %v613
      %v726 = vmax.f32 %v670, %v614
      %v727 = vmax.f32 %v671, %v615
      %v728 = vmax.f32 %v672, %v616
      %v729 = vmax.f32 %v673, %v617
      %v730 = vmax.f32 %v674, %v618
      %v731 = vmax.f32 %v675, %v619
      %v732 = vmax.f32 %v676, %v620
      %v733 = vmax.f32 %v677, %v621
      %vm791 = vcmask 1046528
      %v792 = vrot.slane %v678, 1
      %v793 = vrot.slane %v680, 1
      %v794 = vsel %vm791, %v792, %v793
      %v795 = vrot.slane %v679, 1
      %v796 = vrot.slane %v681, 1
      %v797 = vsel %vm791, %v795, %v796
      %v798 = vrot.slane 0.0, 1
      %v799 = vsel %vm791, %v793, %v798
      %v800 = vsel %vm791, %v796, %v798
      %v801 = vrot.slane %v682, 1
      %v802 = vrot.slane %v684, 1
      %v803 = vsel %vm791, %v801, %v802
      %v804 = vrot.slane %v683, 1
      %v805 = vrot.slane %v685, 1
      %v806 = vsel %vm791, %v804, %v805
      %v807 = vsel %vm791, %v802, %v798
      %v808 = vsel %vm791, %v805, %v798
      %v809 = vrot.slane %v686, 1
      %v810 = vrot.slane %v688, 1
      %v811 = vsel %vm791, %v809, %v810
      %v812 = vrot.slane %v687, 1
      %v813 = vrot.slane %v689, 1
      %v814 = vsel %vm791, %v812, %v813
      %v815 = vsel %vm791, %v810, %v798
      %v816 = vsel %vm791, %v813, %v798
      %v817 = vrot.slane %v690, 1
      %v818 = vrot.slane %v692, 1
      %v819 = vsel %vm791, %v817, %v818
      %v820 = vrot.slane %v691, 1
      %v821 = vrot.slane %v693, 1
      %v822 = vsel %vm791, %v820, %v821
      %v823 = vsel %vm791, %v818, %v798
      %v824 = vsel %vm791, %v821, %v798
      %v825 = vrot.slane %v694, 1
      %v826 = vrot.slane %v696, 1
      %v827 = vsel %vm791, %v825, %v826
      %v828 = vrot.slane %v695, 1
      %v829 = vrot.slane %v697, 1
      %v830 = vsel %vm791, %v828, %v829
      %v831 = vsel %vm791, %v826, %v798
      %v832 = vsel %vm791, %v829, %v798
      %v833 = vrot.slane %v698, 1
      %v834 = vrot.slane %v700, 1
      %v835 = vsel %vm791, %v833, %v834
      %v836 = vrot.slane %v699, 1
      %v837 = vrot.slane %v701, 1
      %v838 = vsel %vm791, %v836, %v837
      %v839 = vsel %vm791, %v834, %v798
      %v840 = vsel %vm791, %v837, %v798
      %v841 = vrot.slane %v702, 1
      %v842 = vrot.slane %v704, 1
      %v843 = vsel %vm791, %v841, %v842
      %v844 = vrot.slane %v703, 1
      %v845 = vrot.slane %v705, 1
      %v846 = vsel %vm791, %v844, %v845
      %v847 = vsel %vm791, %v842, %v798
      %v848 = vsel %vm791, %v845, %v798
      %v849 = vrot.slane %v706, 1
      %v850 = vrot.slane %v708, 1
      %v851 = vsel %vm791, %v849, %v850
      %v852 = vrot.slane %v707, 1
      %v853 = vrot.slane %v709, 1
      %v854 = vsel %vm791, %v852, %v853
      %v855 = vsel %vm791, %v850, %v798
      %v856 = vsel %vm791, %v853, %v798
      %v857 = vrot.slane %v710, 1
      %v858 = vrot.slane %v712, 1
      %v859 = vsel %vm791, %v857, %v858
      %v860 = vrot.slane %v711, 1
      %v861 = vrot.slane %v713, 1
      %v862 = vsel %vm791, %v860, %v861
      %v863 = vsel %vm791, %v858, %v798
      %v864 = vsel %vm791, %v861, %v798
      %v865 = vrot.slane %v714, 1
      %v866 = vrot.slane %v716, 1
      %v867 = vsel %vm791, %v865, %v866
      %v868 = vrot.slane %v715, 1
      %v869 = vrot.slane %v717, 1
      %v870 = vsel %vm791, %v868, %v869
      %v871 = vsel %vm791, %v866, %v798
      %v872 = vsel %vm791, %v869, %v798
      %v873 = vrot.slane %v718, 1
      %v874 = vrot.slane %v720, 1
      %v875 = vsel %vm791, %v873, %v874
      %v876 = vrot.slane %v719, 1
      %v877 = vrot.slane %v721, 1
      %v878 = vsel %vm791, %v876, %v877
      %v879 = vsel %vm791, %v874, %v798
      %v880 = vsel %vm791, %v877, %v798
      %v881 = vrot.slane %v722, 1
      %v882 = vrot.slane %v724, 1
      %v883 = vsel %vm791, %v881, %v882
      %v884 = vrot.slane %v723, 1
      %v885 = vrot.slane %v725, 1
      %v886 = vsel %vm791, %v884, %v885
      %v887 = vsel %vm791, %v882, %v798
      %v888 = vsel %vm791, %v885, %v798
      %v889 = vrot.slane %v726, 1
      %v890 = vrot.slane %v728, 1
      %v891 = vsel %vm791, %v889, %v890
      %v892 = vrot.slane %v727, 1
      %v893 = vrot.slane %v729, 1
      %v894 = vsel %vm791, %v892, %v893
      %v895 = vsel %vm791, %v890, %v798
      %v896 = vsel %vm791, %v893, %v798
      %v897 = vrot.slane %v730, 1
      %v898 = vrot.slane %v732, 1
      %v899 = vsel %vm791, %v897, %v898
      %v900 = vrot.slane %v731, 1
      %v901 = vrot.slane %v733, 1
      %v902 = vsel %vm791, %v900, %v901
      %v903 = vsel %vm791, %v898, %v798
      %v904 = vsel %vm791, %v901, %v798
      %v961 = vmax.f32 %v678, %v794
      %v962 = vmax.f32 %v679, %v797
      %v963 = vmax.f32 %v680, %v799
      %v964 = vmax.f32 %v681, %v800
      %v965 = vmax.f32 %v682, %v803
      %v966 = vmax.f32 %v683, %v806
      %v967 = vmax.f32 %v684, %v807
      %v968 = vmax.f32 %v685, %v808
      %v969 = vmax.f32 %v686, %v811
      %v970 = vmax.f32 %v687, %v814
      %v971 = vmax.f32 %v688, %v815
      %v972 = vmax.f32 %v689, %v816
      %v973 = vmax.f32 %v690, %v819
      %v974 = vmax.f32 %v691, %v822
      %v975 = vmax.f32 %v692, %v823
      %v976 = vmax.f32 %v693, %v824
      %v977 = vmax.f32 %v694, %v827
      %v978 = vmax.f32 %v695, %v830
      %v979 = vmax.f32 %v696, %v831
      %v980 = vmax.f32 %v697, %v832
      %v981 = vmax.f32 %v698, %v835
      %v982 = vmax.f32 %v699, %v838
      %v983 = vmax.f32 %v700, %v839
      %v984 = vmax.f32 %v701, %v840
      %v985 = vmax.f32 %v702, %v843
      %v986 = vmax.f32 %v703, %v846
      %v987 = vmax.f32 %v704, %v847
      %v988 = vmax.f32 %v705, %v848
      %v989 = vmax.f32 %v706, %v851
      %v990 = vmax.f32 %v707, %v854
      %v991 = vmax.f32 %v708, %v855
      %v992 = vmax.f32 %v709, %v856
      %v993 = vmax.f32 %v710, %v859
      %v994 = vmax.f32 %v711, %v862
      %v995 = vmax.f32 %v712, %v863
      %v996 = vmax.f32 %v713, %v864
      %v997 = vmax.f32 %v714, %v867
      %v998 = vmax.f32 %v715, %v870
      %v999 = vmax.f32 %v716, %v871
      %v1000 = vmax.f32 %v717, %v872
      %v1001 = vmax.f32 %v718, %v875
      %v1002 = vmax.f32 %v719, %v878
      %v1003 = vmax.f32 %v720, %v879
      %v1004 = vmax.f32 %v721, %v880
      %v1005 = vmax.f32 %v722, %v883
      %v1006 = vmax.f32 %v723, %v886
      %v1007 = vmax.f32 %v724, %v887
      %v1008 = vmax.f32 %v725, %v888
      %v1009 = vmax.f32 %v726, %v891
      %v1010 = vmax.f32 %v727, %v894
      %v1011 = vmax.f32 %v728, %v895
      %v1012 = vmax.f32 %v729, %v896
      %v1013 = vmax.f32 %v730, %v899
      %v1014 = vmax.f32 %v731, %v902
      %v1015 = vmax.f32 %v732, %v903
      %v1016 = vmax.f32 %v733, %v904
      %vm1017 = vcmask 1045504
      %v1018 = vrot.slane %v678, 2
      %v1019 = vrot.slane %v680, 2
      %v1020 = vsel %vm1017, %v1018, %v1019
      %v1021 = vrot.slane %v679, 2
      %v1022 = vrot.slane %v681, 2
      %v1023 = vsel %vm1017, %v1021, %v1022
      %v1024 = vrot.slane 0.0, 2
      %v1025 = vsel %vm1017, %v1019, %v1024
      %v1026 = vsel %vm1017, %v1022, %v1024
      %v1027 = vrot.slane %v682, 2
      %v1028 = vrot.slane %v684, 2
      %v1029 = vsel %vm1017, %v1027, %v1028
      %v1030 = vrot.slane %v683, 2
      %v1031 = vrot.slane %v685, 2
      %v1032 = vsel %vm1017, %v1030, %v1031
      %v1033 = vsel %vm1017, %v1028, %v1024
      %v1034 = vsel %vm1017, %v1031, %v1024
      %v1035 = vrot.slane %v686, 2
      %v1036 = vrot.slane %v688, 2
      %v1037 = vsel %vm1017, %v1035, %v1036
      %v1038 = vrot.slane %v687, 2
      %v1039 = vrot.slane %v689, 2
      %v1040 = vsel %vm1017, %v1038, %v1039
      %v1041 = vsel %vm1017, %v1036, %v1024
      %v1042 = vsel %vm1017, %v1039, %v1024
      %v1043 = vrot.slane %v690, 2
      %v1044 = vrot.slane %v692, 2
      %v1045 = vsel %vm1017, %v1043, %v1044
      %v1046 = vrot.slane %v691, 2
      %v1047 = vrot.slane %v693, 2
      %v1048 = vsel %vm1017, %v1046, %v1047
      %v1049 = vsel %vm1017, %v1044, %v1024
      %v1050 = vsel %vm1017, %v1047, %v1024
      %v1051 = vrot.slane %v694, 2
      %v1052 = vrot.slane %v696, 2
      %v1053 = vsel %vm1017, %v1051, %v1052
      %v1054 = vrot.slane %v695, 2
      %v1055 = vrot.slane %v697, 2
      %v1056 = vsel %vm1017, %v1054, %v1055
      %v1057 = vsel %vm1017, %v1052, %v1024
      %v1058 = vsel %vm1017, %v1055, %v1024
      %v1059 = vrot.slane %v698, 2
      %v1060 = vrot.slane %v700, 2
      %v1061 = vsel %vm1017, %v1059, %v1060
      %v1062 = vrot.slane %v699, 2
      %v1063 = vrot.slane %v701, 2
      %v1064 = vsel %vm1017, %v1062, %v1063
      %v1065 = vsel %vm1017, %v1060, %v1024
      %v1066 = vsel %vm1017, %v1063, %v1024
      %v1067 = vrot.slane %v702, 2
      %v1068 = vrot.slane %v704, 2
      %v1069 = vsel %vm1017, %v1067, %v1068
      %v1070 = vrot.slane %v703, 2
      %v1071 = vrot.slane %v705, 2
      %v1072 = vsel %vm1017, %v1070, %v1071
      %v1073 = vsel %vm1017, %v1068, %v1024
      %v1074 = vsel %vm1017, %v1071, %v1024
      %v1075 = vrot.slane %v706, 2
      %v1076 = vrot.slane %v708, 2
      %v1077 = vsel %vm1017, %v1075, %v1076
      %v1078 = vrot.slane %v707, 2
      %v1079 = vrot.slane %v709, 2
      %v1080 = vsel %vm1017, %v1078, %v1079
      %v1081 = vsel %vm1017, %v1076, %v1024
      %v1082 = vsel %vm1017, %v1079, %v1024
      %v1083 = vrot.slane %v710, 2
      %v1084 = vrot.slane %v712, 2
      %v1085 = vsel %vm1017, %v1083, %v1084
      %v1086 = vrot.slane %v711, 2
      %v1087 = vrot.slane %v713, 2
      %v1088 = vsel %vm1017, %v1086, %v1087
      %v1089 = vsel %vm1017, %v1084, %v1024
      %v1090 = vsel %vm1017, %v1087, %v1024
      %v1091 = vrot.slane %v714, 2
      %v1092 = vrot.slane %v716, 2
      %v1093 = vsel %vm1017, %v1091, %v1092
      %v1094 = vrot.slane %v715, 2
      %v1095 = vrot.slane %v717, 2
      %v1096 = vsel %vm1017, %v1094, %v1095
      %v1097 = vsel %vm1017, %v1092, %v1024
      %v1098 = vsel %vm1017, %v1095, %v1024
      %v1099 = vrot.slane %v718, 2
      %v1100 = vrot.slane %v720, 2
      %v1101 = vsel %vm1017, %v1099, %v1100
      %v1102 = vrot.slane %v719, 2
      %v1103 = vrot.slane %v721, 2
      %v1104 = vsel %vm1017, %v1102, %v1103
      %v1105 = vsel %vm1017, %v1100, %v1024
      %v1106 = vsel %vm1017, %v1103, %v1024
      %v1107 = vrot.slane %v722, 2
      %v1108 = vrot.slane %v724, 2
      %v1109 = vsel %vm1017, %v1107, %v1108
      %v1110 = vrot.slane %v723, 2
      %v1111 = vrot.slane %v725, 2
      %v1112 = vsel %vm1017, %v1110, %v1111
      %v1113 = vsel %vm1017, %v1108, %v1024
      %v1114 = vsel %vm1017, %v1111, %v1024
      %v1115 = vrot.slane %v726, 2
      %v1116 = vrot.slane %v728, 2
      %v1117 = vsel %vm1017, %v1115, %v1116
      %v1118 = vrot.slane %v727, 2
      %v1119 = vrot.slane %v729, 2
      %v1120 = vsel %vm1017, %v1118, %v1119
      %v1121 = vsel %vm1017, %v1116, %v1024
      %v1122 = vsel %vm1017, %v1119, %v1024
      %v1123 = vrot.slane %v730, 2
      %v1124 = vrot.slane %v732, 2
      %v1125 = vsel %vm1017, %v1123, %v1124
      %v1126 = vrot.slane %v731, 2
      %v1127 = vrot.slane %v733, 2
      %v1128 = vsel %vm1017, %v1126, %v1127
      %v1129 = vsel %vm1017, %v1124, %v1024
      %v1130 = vsel %vm1017, %v1127, %v1024
      %v1187 = vmax.f32 %v961, %v1020
      %v1188 = vmax.f32 %v962, %v1023
      %v1189 = vmax.f32 %v963, %v1025
      %v1190 = vmax.f32 %v964, %v1026
      %v1191 = vmax.f32 %v965, %v1029
      %v1192 = vmax.f32 %v966, %v1032
      %v1193 = vmax.f32 %v967, %v1033
      %v1194 = vmax.f32 %v968, %v1034
      %v1195 = vmax.f32 %v969, %v1037
      %v1196 = vmax.f32 %v970, %v1040
      %v1197 = vmax.f32 %v971, %v1041
      %v1198 = vmax.f32 %v972, %v1042
      %v1199 = vmax.f32 %v973, %v1045
      %v1200 = vmax.f32 %v974, %v1048
      %v1201 = vmax.f32 %v975, %v1049
      %v1202 = vmax.f32 %v976, %v1050
      %v1203 = vmax.f32 %v977, %v1053
      %v1204 = vmax.f32 %v978, %v1056
      %v1205 = vmax.f32 %v979, %v1057
      %v1206 = vmax.f32 %v980, %v1058
      %v1207 = vmax.f32 %v981, %v1061
      %v1208 = vmax.f32 %v982, %v1064
      %v1209 = vmax.f32 %v983, %v1065
      %v1210 = vmax.f32 %v984, %v1066
      %v1211 = vmax.f32 %v985, %v1069
      %v1212 = vmax.f32 %v986, %v1072
      %v1213 = vmax.f32 %v987, %v1073
      %v1214 = vmax.f32 %v988, %v1074
      %v1215 = vmax.f32 %v989, %v1077
      %v1216 = vmax.f32 %v990, %v1080
      %v1217 = vmax.f32 %v991, %v1081
      %v1218 = vmax.f32 %v992, %v1082
      %v1219 = vmax.f32 %v993, %v1085
      %v1220 = vmax.f32 %v994, %v1088
      %v1221 = vmax.f32 %v995, %v1089
      %v1222 = vmax.f32 %v996, %v1090
      %v1223 = vmax.f32 %v997, %v1093
      %v1224 = vmax.f32 %v998, %v1096
      %v1225 = vmax.f32 %v999, %v1097
      %v1226 = vmax.f32 %v1000, %v1098
      %v1227 = vmax.f32 %v1001, %v1101
      %v1228 = vmax.f32 %v1002, %v1104
      %v1229 = vmax.f32 %v1003, %v1105
      %v1230 = vmax.f32 %v1004, %v1106
      %v1231 = vmax.f32 %v1005, %v1109
      %v1232 = vmax.f32 %v1006, %v1112
      %v1233 = vmax.f32 %v1007, %v1113
      %v1234 = vmax.f32 %v1008, %v1114
      %v1235 = vmax.f32 %v1009, %v1117
      %v1236 = vmax.f32 %v1010, %v1120
      %v1237 = vmax.f32 %v1011, %v1121
      %v1238 = vmax.f32 %v1012, %v1122
      %v1239 = vmax.f32 %v1013, %v1125
      %v1240 = vmax.f32 %v1014, %v1128
      %v1241 = vmax.f32 %v1015, %v1129
      %v1242 = vmax.f32 %v1016, %v1130
      %v1243 = vld [vmem:[%s3] sm:$0xff]
      %v1244 = vld [vmem:[%s3 + $0x8] sm:$0xff]
      %v1245 = vld [vmem:[%s3 + $0x10] sm:$0xff]
      %v1246 = vld [vmem:[%s3 + $0x18] sm:$0xff]
      %v1247 = vld [vmem:[%s3 + $0x20] sm:$0xff]
      %v1248 = vld [vmem:[%s3 + $0x28] sm:$0xff]
      %v1249 = vld [vmem:[%s3 + $0x30] sm:$0xff]
      %v1250 = vld [vmem:[%s3 + $0x38] sm:$0xff]
      %v1251 = vld [vmem:[%s3 + $0x40] sm:$0xff]
      %v1252 = vld [vmem:[%s3 + $0x48] sm:$0xff]
      %v1253 = vld [vmem:[%s3 + $0x50] sm:$0xff]
      %v1254 = vld [vmem:[%s3 + $0x58] sm:$0xff]
      %v1255 = vld [vmem:[%s3 + $0x60] sm:$0x1]
      %v1256 = vld [vmem:[%s3 + $0x68] sm:$0x1]
      %vm1257 = vcmask 785408
      %v1259 = vsel %vm1257, %v1244, 0
      %v1262 = vsel %vm1257, %v1246, 0
      %v1265 = vsel %vm1257, %v1248, 0
      %v1268 = vsel %vm1257, %v1250, 0
      %v1271 = vsel %vm1257, %v1252, 0
      %v1274 = vsel %vm1257, %v1254, 0
      %v1277 = vsel %vm1257, %v1256, 0
      %1279 = vmatprep.subr.mxu0 %v1218
      %1280 = vmatpush1.msra.mxu0 %v1217
      %1281 = vmatprep.subr.mxu0 %v1216
      %1282 = vmatpush1.msra.mxu0 %v1215
      %1283 = vmatprep.subr.mxu0 %v1214
      %1284 = vmatpush1.msra.mxu0 %v1213
      %1285 = vmatprep.subr.mxu0 %v1212
      %1286 = vmatpush1.msra.mxu0 %v1211
      %1287 = vmatprep.subr.mxu0 %v1210
      %1288 = vmatpush1.msra.mxu0 %v1209
      %1289 = vmatprep.subr.mxu0 %v1208
      %1290 = vmatpush1.msra.mxu0 %v1207
      %1291 = vmatprep.subr.mxu0 %v1206
      %1292 = vmatpush1.msra.mxu0 %v1205
      %1293 = vmatprep.subr.mxu0 %v1204
      %1294 = vmatpush1.msra.mxu0 %v1203
      %1295 = vmatprep.subr.mxu0 %v1202
      %1296 = vmatpush1.msra.mxu0 %v1201
      %1297 = vmatprep.subr.mxu0 %v1200
      %1298 = vmatpush1.msra.mxu0 %v1199
      %1299 = vmatprep.subr.mxu0 %v1198
      %1300 = vmatpush1.msra.mxu0 %v1197
      %1301 = vmatprep.subr.mxu0 %v1196
      %1302 = vmatpush1.msra.mxu0 %v1195
      %1303 = vmatprep.subr.mxu0 %v1194
      %1304 = vmatpush1.msra.mxu0 %v1193
      %1305 = vmatprep.subr.mxu0 %v1192
      %1306 = vmatpush1.msra.mxu0 %v1191
      %1307 = vmatprep.subr.mxu0 %v1190
      %1308 = vmatpush1.msra.mxu0 %v1189
      %1309 = vmatprep.subr.mxu0 %v1188
      %1310 = vmatpush1.msra.mxu0 %v1187
      %1311 = vmatprep.subr.mxu0 0.0
      %1312 = vmatpush2.msra.mxu0 0.0
      %1313 = vmatprep.subr.mxu0 0.0
      %1314 = vmatpush2.msra.mxu0 0.0
      %1315 = vmatprep.subr.mxu0 0.0
      %1316 = vmatpush2.msra.mxu0 0.0
      %1317 = vmatprep.subr.mxu0 0.0
      %1318 = vmatpush2.msra.mxu0 0.0
      %1319 = vmatprep.subr.mxu0 %v1242
      %1320 = vmatpush2.msra.mxu0 %v1241
      %1321 = vmatprep.subr.mxu0 %v1240
      %1322 = vmatpush2.msra.mxu0 %v1239
      %1323 = vmatprep.subr.mxu0 %v1238
      %1324 = vmatpush2.msra.mxu0 %v1237
      %1325 = vmatprep.subr.mxu0 %v1236
      %1326 = vmatpush2.msra.mxu0 %v1235
      %1327 = vmatprep.subr.mxu0 %v1234
      %1328 = vmatpush2.msra.mxu0 %v1233
      %1329 = vmatprep.subr.mxu0 %v1232
      %1330 = vmatpush2.msra.mxu0 %v1231
      %1331 = vmatprep.subr.mxu0 %v1230
      %1332 = vmatpush2.msra.mxu0 %v1229
      %1333 = vmatprep.subr.mxu0 %v1228
      %1334 = vmatpush2.msra.mxu0 %v1227
      %1335 = vmatprep.subr.mxu0 %v1226
      %1336 = vmatpush2.msra.mxu0 %v1225
      %1337 = vmatprep.subr.mxu0 %v1224
      %1338 = vmatpush2.msra.mxu0 %v1223
      %1339 = vmatprep.subr.mxu0 %v1222
      %1340 = vmatpush2.msra.mxu0 %v1221
      %1341 = vmatprep.subr.mxu0 %v1220
      %1342 = vmatpush2.msra.mxu0 %v1219
      %1343 = vmatprep.mubr.f32.mxu0 %v1259
      %1344 = vmatmul.mubr.f32.gmra.mxu0 %v1243
      %v1345 = vpop.f32.mrf.mxu0
      %v1346 = vadd.f32 0.0, %v1345
      %v1347 = vpop.f32.mrf.mxu0
      %v1348 = vadd.f32 0.0, %v1347
      %1349 = vmatprep.mubr.f32.mxu0 %v1262
      %1350 = vmatmul.mubr.f32.gmra.mxu0 %v1245
      %v1351 = vpop.f32.mrf.mxu0
      %v1352 = vadd.f32 0.0, %v1351
      %v1353 = vpop.f32.mrf.mxu0
      %v1354 = vadd.f32 0.0, %v1353
      %1355 = vmatprep.mubr.f32.mxu0 %v1265
      %1356 = vmatmul.mubr.f32.gmra.mxu0 %v1247
      %v1357 = vpop.f32.mrf.mxu0
      %v1358 = vadd.f32 0.0, %v1357
      %v1359 = vpop.f32.mrf.mxu0
      %v1360 = vadd.f32 0.0, %v1359
      %1361 = vmatprep.mubr.f32.mxu0 %v1268
      %1362 = vmatmul.mubr.f32.gmra.mxu0 %v1249
      %v1363 = vpop.f32.mrf.mxu0
      %v1364 = vadd.f32 0.0, %v1363
      %v1365 = vpop.f32.mrf.mxu0
      %v1366 = vadd.f32 0.0, %v1365
      %1367 = vmatprep.mubr.f32.mxu0 %v1271
      %1368 = vmatmul.mubr.f32.gmra.mxu0 %v1251
      %v1369 = vpop.f32.mrf.mxu0
      %v1370 = vadd.f32 0.0, %v1369
      %v1371 = vpop.f32.mrf.mxu0
      %v1372 = vadd.f32 0.0, %v1371
      %1373 = vmatprep.mubr.f32.mxu0 %v1274
      %1374 = vmatmul.mubr.f32.gmra.mxu0 %v1253
      %v1375 = vpop.f32.mrf.mxu0
      %v1376 = vadd.f32 0.0, %v1375
      %v1377 = vpop.f32.mrf.mxu0
      %v1378 = vadd.f32 0.0, %v1377
      %1379 = vmatprep.mubr.f32.mxu0 %v1277
      %1380 = vmatmul.mubr.f32.gmra.mxu0 %v1255
      %v1381 = vpop.f32.mrf.mxu0
      %v1382 = vadd.f32 0.0, %v1381
      %v1383 = vpop.f32.mrf.mxu0
      %v1384 = vadd.f32 0.0, %v1383
      %1385 = vdwg.mxu0
      %v1386 = vld [vmem:[%s4] sm:$0xff]
      %v1387 = vld [vmem:[%s4 + $0x8] sm:$0xff]
      %v1388 = vld [vmem:[%s4 + $0x10] sm:$0xff]
      %v1389 = vld [vmem:[%s4 + $0x18] sm:$0xff]
      %v1390 = vld [vmem:[%s4 + $0x20] sm:$0xff]
      %v1391 = vld [vmem:[%s4 + $0x28] sm:$0xff]
      %v1392 = vld [vmem:[%s4 + $0x30] sm:$0xff]
      %v1393 = vld [vmem:[%s4 + $0x38] sm:$0xff]
      %v1394 = vld [vmem:[%s4 + $0x40] sm:$0xff]
      %v1395 = vld [vmem:[%s4 + $0x48] sm:$0xff]
      %v1396 = vld [vmem:[%s4 + $0x50] sm:$0xff]
      %v1397 = vld [vmem:[%s4 + $0x58] sm:$0xff]
      %v1398 = vld [vmem:[%s4 + $0x60] sm:$0xff]
      %v1399 = vld [vmem:[%s4 + $0x68] sm:$0xff]
      %v1400 = vld [vmem:[%s4 + $0x70] sm:$0xff]
      %v1401 = vld [vmem:[%s4 + $0x78] sm:$0xff]
      %v1402 = vld [vmem:[%s4 + $0x80] sm:$0xff]
      %v1403 = vld [vmem:[%s4 + $0x88] sm:$0xff]
      %v1404 = vld [vmem:[%s4 + $0x90] sm:$0xff]
      %v1405 = vld [vmem:[%s4 + $0x98] sm:$0xff]
      %v1406 = vld [vmem:[%s4 + $0xa0] sm:$0xff]
      %v1407 = vld [vmem:[%s4 + $0xa8] sm:$0xff]
      %v1408 = vld [vmem:[%s4 + $0xb0] sm:$0xff]
      %v1409 = vld [vmem:[%s4 + $0xb8] sm:$0xff]
      %vm1410 = vcmask 523264
      %v1412 = vsel %vm1410, %v1348, 0
      %v1415 = vsel %vm1410, %v1354, 0
      %v1418 = vsel %vm1410, %v1360, 0
      %v1421 = vsel %vm1410, %v1366, 0
      %v1424 = vsel %vm1410, %v1372, 0
      %v1427 = vsel %vm1410, %v1378, 0
      %v1430 = vsel %vm1410, %v1384, 0
      %1432 = vmatprep.subr.mxu0 0.0
      %1433 = vmatpush1.msra.mxu0 %v1401
      %1434 = vmatprep.subr.mxu0 0.0
      %1435 = vmatpush1.msra.mxu0 %v1400
      %1436 = vmatprep.subr.mxu0 0.0
      %1437 = vmatpush1.msra.mxu0 %v1399
      %1438 = vmatprep.subr.mxu0 0.0
      %1439 = vmatpush1.msra.mxu0 %v1398
      %1440 = vmatprep.subr.mxu0 0.0
      %1441 = vmatpush1.msra.mxu0 %v1397
      %1442 = vmatprep.subr.mxu0 0.0
      %1443 = vmatpush1.msra.mxu0 %v1396
      %1444 = vmatprep.subr.mxu0 0.0
      %1445 = vmatpush1.msra.mxu0 %v1395
      %1446 = vmatprep.subr.mxu0 0.0
      %1447 = vmatpush1.msra.mxu0 %v1394
      %1448 = vmatprep.subr.mxu0 0.0
      %1449 = vmatpush1.msra.mxu0 %v1393
      %1450 = vmatprep.subr.mxu0 0.0
      %1451 = vmatpush1.msra.mxu0 %v1392
      %1452 = vmatprep.subr.mxu0 0.0
      %1453 = vmatpush1.msra.mxu0 %v1391
      %1454 = vmatprep.subr.mxu0 0.0
      %1455 = vmatpush1.msra.mxu0 %v1390
      %1456 = vmatprep.subr.mxu0 0.0
      %1457 = vmatpush1.msra.mxu0 %v1389
      %1458 = vmatprep.subr.mxu0 0.0
      %1459 = vmatpush1.msra.mxu0 %v1388
      %1460 = vmatprep.subr.mxu0 0.0
      %1461 = vmatpush1.msra.mxu0 %v1387
      %1462 = vmatprep.subr.mxu0 0.0
      %1463 = vmatpush1.msra.mxu0 %v1386
      %1464 = vmatprep.subr.mxu0 0.0
      %1465 = vmatpush2.msra.mxu0 0.0
      %1466 = vmatprep.subr.mxu0 0.0
      %1467 = vmatpush2.msra.mxu0 0.0
      %1468 = vmatprep.subr.mxu0 0.0
      %1469 = vmatpush2.msra.mxu0 0.0
      %1470 = vmatprep.subr.mxu0 0.0
      %1471 = vmatpush2.msra.mxu0 0.0
      %1472 = vmatprep.subr.mxu0 0.0
      %1473 = vmatpush2.msra.mxu0 0.0
      %1474 = vmatprep.subr.mxu0 0.0
      %1475 = vmatpush2.msra.mxu0 0.0
      %1476 = vmatprep.subr.mxu0 0.0
      %1477 = vmatpush2.msra.mxu0 0.0
      %1478 = vmatprep.subr.mxu0 0.0
      %1479 = vmatpush2.msra.mxu0 0.0
      %1480 = vmatprep.subr.mxu0 0.0
      %1481 = vmatpush2.msra.mxu0 %v1409
      %1482 = vmatprep.subr.mxu0 0.0
      %1483 = vmatpush2.msra.mxu0 %v1408
      %1484 = vmatprep.subr.mxu0 0.0
      %1485 = vmatpush2.msra.mxu0 %v1407
      %1486 = vmatprep.subr.mxu0 0.0
      %1487 = vmatpush2.msra.mxu0 %v1406
      %1488 = vmatprep.subr.mxu0 0.0
      %1489 = vmatpush2.msra.mxu0 %v1405
      %1490 = vmatprep.subr.mxu0 0.0
      %1491 = vmatpush2.msra.mxu0 %v1404
      %1492 = vmatprep.subr.mxu0 0.0
      %1493 = vmatpush2.msra.mxu0 %v1403
      %1494 = vmatprep.subr.mxu0 0.0
      %1495 = vmatpush2.msra.mxu0 %v1402
      %1496 = vmatprep.mubr.f32.mxu0 %v1412
      %1497 = vmatmul.mubr.f32.gmra.mxu0 %v1346
      %v1498 = vpop.f32.mrf.mxu0
      %v1499 = vadd.f32 0.0, %v1498
      %v1500 = vpop.f32.mrf.mxu0
      %1501 = vmatprep.mubr.f32.mxu0 %v1415
      %1502 = vmatmul.mubr.f32.gmra.mxu0 %v1352
      %v1503 = vpop.f32.mrf.mxu0
      %v1504 = vadd.f32 0.0, %v1503
      %v1505 = vpop.f32.mrf.mxu0
      %1506 = vmatprep.mubr.f32.mxu0 %v1418
      %1507 = vmatmul.mubr.f32.gmra.mxu0 %v1358
      %v1508 = vpop.f32.mrf.mxu0
      %v1509 = vadd.f32 0.0, %v1508
      %v1510 = vpop.f32.mrf.mxu0
      %1511 = vmatprep.mubr.f32.mxu0 %v1421
      %1512 = vmatmul.mubr.f32.gmra.mxu0 %v1364
      %v1513 = vpop.f32.mrf.mxu0
      %v1514 = vadd.f32 0.0, %v1513
      %v1515 = vpop.f32.mrf.mxu0
      %1516 = vmatprep.mubr.f32.mxu0 %v1424
      %1517 = vmatmul.mubr.f32.gmra.mxu0 %v1370
      %v1518 = vpop.f32.mrf.mxu0
      %v1519 = vadd.f32 0.0, %v1518
      %v1520 = vpop.f32.mrf.mxu0
      %1521 = vmatprep.mubr.f32.mxu0 %v1427
      %1522 = vmatmul.mubr.f32.gmra.mxu0 %v1376
      %v1523 = vpop.f32.mrf.mxu0
      %v1524 = vadd.f32 0.0, %v1523
      %v1525 = vpop.f32.mrf.mxu0
      %1526 = vmatprep.mubr.f32.mxu0 %v1430
      %1527 = vmatmul.mubr.f32.gmra.mxu0 %v1382
      %v1528 = vpop.f32.mrf.mxu0
      %v1529 = vadd.f32 0.0, %v1528
      %v1530 = vpop.f32.mrf.mxu0
      %1531 = vdwg.mxu0
      %1532 = vst [vmem:[%s224] sm:$0xff] %v1499
      %1533 = vst [vmem:[%s224 + $0x8] sm:$0xff] %v1504
      %1534 = vst [vmem:[%s224 + $0x10] sm:$0xff] %v1509
      %1535 = vst [vmem:[%s224 + $0x18] sm:$0xff] %v1514
      %1536 = vst [vmem:[%s224 + $0x20] sm:$0xff] %v1519
      %1537 = vst [vmem:[%s224 + $0x28] sm:$0xff] %v1524
      %1538 = vst [vmem:[%s224 + $0x30] sm:$0x1] %v1529
      %p1539 = scmp.lt.s32.totalorder %s16, 1
      %s1540 = scalar_select %p1539, %s16, 1
      %s1541 = smul.addr %s1540, 7
      %s1542 = smul.addr %s1541, 8
      %s1543 = scalar_lea.vmem %s5, %s1542
      // Predicated region
      $region41: #{forward.1} parent=39 // pred_check
        %p1544 = pneg %p144
      $region42: #{forward.1} parent=39 // pred_check_branch
        %1546 = sbr.rel (%p1544) target = $region44
      $region43: #{forward.1} parent=39 // pred_region
        _
      $region44: #{forward.1} parent=39 // pred_fallthru
        _
    $region40: #{forward.1} parent=5 // pred_fallthru
      _
    %p1547 = scmp.le.s32.totalorder 2, %s11
    // Predicated region
    $region45: #{forward.1} parent=5 // pred_check
      %p1548 = pneg %p1547
    $region46: #{forward.1} parent=5 // pred_check_branch
      %1550 = sbr.rel (%p1548) target = $region48
    $region47: #{forward.1} parent=5 // pred_region
      %s1551 = ssub.s32 %s11, 2
      // Predicated region
      $region49: #{forward.1} parent=47 // pred_check
        %p1552 = pneg %p150
      $region50: #{forward.1} parent=47 // pred_check_branch
        %1554 = sbr.rel (%p1552) target = $region52
      $region51: #{forward.1} parent=47 // pred_region
        %p1555 = scmp.lt.s32.totalorder %s17, 1
        %s1556 = scalar_select %p1555, %s17, 1
        %s1557 = smul.addr %s1556, 7
        %s1558 = smul.addr %s1557, 8
        %s1559 = scalar_lea.vmem %s5, %s1558
      $region52: #{forward.1} parent=47 // pred_fallthru
        _
    $region48: #{forward.1} parent=5 // pred_fallthru
      _
  $region6: #{forward.1} parent=0 // loop_footer
    %s15 = sadd.s32 1, %s11
  $region7: #{forward.1} parent=0 // loop_footer_branch
    %10 = sbr.rel target = $region3
  $region8: #{forward.1} parent=0 // loop_exit
    _

</llo_original>
